<compile_context>
chip_gen: v5e
topology: v5e:2x2
jax: 0.10.0
libtpu: 0.0.40
codegen_flags: <defaults>
</compile_context>

<pallas_src>
import functools

import jax
import jax.numpy as jnp
from jax.experimental import pallas as pl
from jax.experimental.pallas import tpu as pltpu


def _round_up(n, m):
    return ((n + m - 1) // m) * m


# ----------------------------------------------------------------------------
# Kernel
# ----------------------------------------------------------------------------
def _vae_kernel(
    x_ref, eps_ref,
    w1_ref, b1_ref,
    wms_ref, bms_ref,
    w2_ref, b2_ref,
    w3_ref, b3_ref,
    xrec_ref, musig_ref,
    *, zp,
):
    # ---- encode: h = relu(x @ W1 + b1) ----
    x = x_ref[...]                                    # bf16 (TILE_M, IN_P)
    h = jnp.dot(x, w1_ref[...], preferred_element_type=jnp.float32) + b1_ref[...]
    h = jnp.maximum(h, 0.0)

    # ---- fused mu | sigma projection (lane-dense (TILE_M, 2*zp)) ----
    ms = jnp.dot(h.astype(jnp.bfloat16), wms_ref[...],
                 preferred_element_type=jnp.float32) + bms_ref[...]
    mu = ms[:, :zp]                                   # vreg-aligned 128-lane slices
    sigma = ms[:, zp:]

    # ---- reparameterize: z = mu + sigma * eps (f32 VPU) ----
    z = mu + sigma * eps_ref[...]

    # ---- decode: x_rec = sigmoid(relu(z @ W2 + b2) @ W3 + b3) ----
    h2 = jnp.dot(z.astype(jnp.bfloat16), w2_ref[...],
                 preferred_element_type=jnp.float32) + b2_ref[...]
    h2 = jnp.maximum(h2, 0.0)
    logits = jnp.dot(h2.astype(jnp.bfloat16), w3_ref[...],
                     preferred_element_type=jnp.float32) + b3_ref[...]

    xrec_ref[...] = jax.nn.sigmoid(logits)
    musig_ref[...] = ms


# ----------------------------------------------------------------------------
# Parameter preparation (call once; keep result device-resident)
# ----------------------------------------------------------------------------
def prepare_params(params):
    """Pad to lane-dense (128-multiple) shapes, fuse mu|sigma, cast weights to bf16."""
    w1, b1, wmu, bmu, wsig, bsig, w2, b2, w3, b3 = params
    in_dim, h_dim = w1.shape
    z_dim = wmu.shape[1]

    in_p = _round_up(in_dim, 128)
    h_p = _round_up(h_dim, 128)
    z_p = _round_up(z_dim, 128)

    def pad_w(w, rows, cols):
        return jnp.pad(w, ((0, rows - w.shape[0]),
                           (0, cols - w.shape[1]))).astype(jnp.bfloat16)

    def pad_b(b, cols):
        b = b.reshape(1, -1).astype(jnp.float32)
        return jnp.pad(b, ((0, 0), (0, cols - b.shape[1])))

    w1p, b1p = pad_w(w1, in_p, h_p), pad_b(b1, h_p)
    wms = jnp.concatenate([pad_w(wmu, h_p, z_p), pad_w(wsig, h_p, z_p)], axis=1)
    bms = jnp.concatenate([pad_b(bmu, z_p), pad_b(bsig, z_p)], axis=1)
    w2p, b2p = pad_w(w2, z_p, h_p), pad_b(b2, h_p)
    w3p, b3p = pad_w(w3, h_p, in_p), pad_b(b3, in_p)

    tensors = (w1p, b1p, wms, bms, w2p, b2p, w3p, b3p)
    return tensors, (in_dim, h_dim, z_dim), (in_p, h_p, z_p)


# ----------------------------------------------------------------------------
# Wrapper
# ----------------------------------------------------------------------------
def vae_forward(x, eps, prepared, *, tile_m=128):
    """x: (N, in_dim) f32, eps: (N, z_dim) f32. Returns (x_rec, mu, sigma)."""
    tensors, (in_dim, h_dim, z_dim), (in_p, h_p, z_p) = prepared
    N = x.shape[0]

    # Batch tile: multiple of 8 sublanes; 128 when the batch is big enough
    # (don't blow up tiny batches to 128 rows of padding).
    tile_m = min(tile_m, _round_up(N, 8))
    n_pad = _round_up(N, tile_m)
    grid = (n_pad // tile_m,)

    x_p = jnp.pad(x.astype(jnp.bfloat16),
                  ((0, n_pad - N), (0, in_p - in_dim)))
    eps_p = jnp.pad(eps.astype(jnp.float32),
                    ((0, n_pad - N), (0, z_p - z_dim)))

    def row_spec(cols):
        return pl.BlockSpec((tile_m, cols), lambda i: (i, 0))

    def resident_spec(a):
        return pl.BlockSpec(a.shape, lambda i: (0, 0))

    kernel = functools.partial(_vae_kernel, zp=z_p)

    xrec_p, musig_p = pl.pallas_call(
        kernel,
        out_shape=(
            jax.ShapeDtypeStruct((n_pad, in_p), jnp.float32),
            jax.ShapeDtypeStruct((n_pad, 2 * z_p), jnp.float32),
        ),
        grid=grid,
        in_specs=[row_spec(in_p), row_spec(z_p)]
                 + [resident_spec(a) for a in tensors],
        out_specs=(row_spec(in_p), row_spec(2 * z_p)),
        compiler_params=pltpu.CompilerParams(
            dimension_semantics=("parallel",),
            vmem_limit_bytes=32 << 20,
        ),
    )(x_p, eps_p, *tensors)

    x_rec = xrec_p[:N, :in_dim]
    mu = musig_p[:N, :z_dim]
    sigma = musig_p[:N, z_p:z_p + z_dim]
    return x_rec, mu, sigma


# ----------------------------------------------------------------------------
# Init + references
# ----------------------------------------------------------------------------
def init_params(key, in_dim, h_dim, z_dim):
    """PyTorch-Linear-style init, weights stored (fan_in, fan_out)."""
    def linear(k, fan_in, fan_out):
        kw, kb = jax.random.split(k)
        bound = 1.0 / jnp.sqrt(fan_in)
        w = jax.random.uniform(kw, (fan_in, fan_out), jnp.float32, -bound, bound)
        b = jax.random.uniform(kb, (1, fan_out), jnp.float32, -bound, bound)
        return w, b

    k1, k2, k3, k4, k5 = jax.random.split(key, 5)
    w1, b1 = linear(k1, in_dim, h_dim)     # img2_hid
    wmu, bmu = linear(k2, h_dim, z_dim)    # hid2_mu
    wsig, bsig = linear(k3, h_dim, z_dim)  # hid2_sigma
    w2, b2 = linear(k4, z_dim, h_dim)      # z2_hid
    w3, b3 = linear(k5, h_dim, in_dim)     # hid2_img
    return (w1, b1, wmu, bmu, wsig, bsig, w2, b2, w3, b3)


def vae_reference_f32(x, eps, params):
    w1, b1, wmu, bmu, wsig, bsig, w2, b2, w3, b3 = params
    h = jax.nn.relu(x @ w1 + b1)
    mu = h @ wmu + bmu
    sigma = h @ wsig + bsig
    z = mu + sigma * eps
    h2 = jax.nn.relu(z @ w2 + b2)
    x_rec = jax.nn.sigmoid(h2 @ w3 + b3)
    return x_rec, mu, sigma


def vae_reference_bf16(x, eps, params):
    """Reference with the same bf16-operand / f32-accumulate matmul recipe."""
    w1, b1, wmu, bmu, wsig, bsig, w2, b2, w3, b3 = params
    bf = lambda a: a.astype(jnp.bfloat16)
    dot = lambda a, b: jnp.dot(bf(a), bf(b), preferred_element_type=jnp.float32)
    h = jax.nn.relu(dot(x, w1) + b1)
    mu = dot(h, wmu) + bmu
    sigma = dot(h, wsig) + bsig
    z = mu + sigma * eps
    h2 = jax.nn.relu(dot(z, w2) + b2)
    x_rec = jax.nn.sigmoid(dot(h2, w3) + b3)
    return x_rec, mu, sigma


if __name__ == "__main__":
    # Small shapes consistent with the module (flattened image -> MLP VAE).
    batch, in_dim, h_dim, z_dim = 8, 256, 200, 20

    root = jax.random.PRNGKey(0)
    k_param, k_x, k_eps = jax.random.split(root, 3)

    params = init_params(k_param, in_dim, h_dim, z_dim)
    prepared = prepare_params(params)  # pad/fuse/cast once, keep device-resident

    x = jax.random.uniform(k_x, (batch, in_dim), jnp.float32)    # "image" in [0,1)
    eps = jax.random.normal(k_eps, (batch, z_dim), jnp.float32)  # torch.randn_like(sigma)

    x_rec, mu, sigma = vae_forward(x, eps, prepared)
    jax.block_until_ready((x_rec, mu, sigma))

    # Correctness: tight vs bf16-matched reference, loose vs pure-f32 reference.
    xr_b, mu_b, sg_b = vae_reference_bf16(x, eps, params)
    xr_f, mu_f, sg_f = vae_reference_f32(x, eps, params)

    assert x_rec.shape == (batch, in_dim)
    assert mu.shape == (batch, z_dim) and sigma.shape == (batch, z_dim)
    assert jnp.allclose(x_rec, xr_b, atol=1e-3, rtol=1e-3)
    assert jnp.allclose(mu, mu_b, atol=1e-3, rtol=1e-3)
    assert jnp.allclose(sigma, sg_b, atol=1e-3, rtol=1e-3)
    assert jnp.allclose(x_rec, xr_f, atol=5e-2, rtol=5e-2)
    assert jnp.allclose(mu, mu_f, atol=5e-2, rtol=5e-2)
    assert jnp.allclose(sigma, sg_f, atol=5e-2, rtol=5e-2)

    print("KERNEL_OK")
</pallas_src>

<mosaic_0001>
module attributes {stable_mosaic.version = 11 : i64} {
  func.func @_vae_kernel(%arg0: i32, %arg1: memref<8x256xbf16, #tpu.memory_space<vmem>>, %arg2: memref<8x128xf32, #tpu.memory_space<vmem>>, %arg3: memref<256x256xbf16, #tpu.memory_space<vmem>>, %arg4: memref<1x256xf32, #tpu.memory_space<vmem>>, %arg5: memref<256x256xbf16, #tpu.memory_space<vmem>>, %arg6: memref<1x256xf32, #tpu.memory_space<vmem>>, %arg7: memref<128x256xbf16, #tpu.memory_space<vmem>>, %arg8: memref<1x256xf32, #tpu.memory_space<vmem>>, %arg9: memref<256x256xbf16, #tpu.memory_space<vmem>>, %arg10: memref<1x256xf32, #tpu.memory_space<vmem>>, %arg11: memref<8x256xf32, #tpu.memory_space<vmem>>, %arg12: memref<8x256xf32, #tpu.memory_space<vmem>>) attributes {dimension_semantics = [#tpu.dimension_semantics<parallel>], iteration_bounds = array<i64: 1>, scalar_prefetch = 0 : i64, scratch_operands = 0 : i64, tpu.core_type = #tpu.core_type<tc>, window_params = [{transform_indices = @transform_0, window_bounds = array<i64: 8, 256>}, {transform_indices = @transform_1, window_bounds = array<i64: 8, 128>}, {pipeline_mode = #tpu.pipeline_mode<synchronous>, transform_indices = @transform_2, window_bounds = array<i64: 256, 256>}, {pipeline_mode = #tpu.pipeline_mode<synchronous>, transform_indices = @transform_3, window_bounds = array<i64: 1, 256>}, {pipeline_mode = #tpu.pipeline_mode<synchronous>, transform_indices = @transform_4, window_bounds = array<i64: 256, 256>}, {pipeline_mode = #tpu.pipeline_mode<synchronous>, transform_indices = @transform_5, window_bounds = array<i64: 1, 256>}, {pipeline_mode = #tpu.pipeline_mode<synchronous>, transform_indices = @transform_6, window_bounds = array<i64: 128, 256>}, {pipeline_mode = #tpu.pipeline_mode<synchronous>, transform_indices = @transform_7, window_bounds = array<i64: 1, 256>}, {pipeline_mode = #tpu.pipeline_mode<synchronous>, transform_indices = @transform_8, window_bounds = array<i64: 256, 256>}, {pipeline_mode = #tpu.pipeline_mode<synchronous>, transform_indices = @transform_9, window_bounds = array<i64: 1, 256>}, {transform_indices = @transform_10, window_bounds = array<i64: 8, 256>}, {transform_indices = @transform_11, window_bounds = array<i64: 8, 256>}]} {
    %c0 = arith.constant 0 : index
    %c0_0 = arith.constant 0 : index
    %0 = vector.load %arg1[%c0, %c0_0] : memref<8x256xbf16, #tpu.memory_space<vmem>>, vector<8x256xbf16>
    %c0_1 = arith.constant 0 : index
    %c0_2 = arith.constant 0 : index
    %1 = vector.load %arg3[%c0_1, %c0_2] : memref<256x256xbf16, #tpu.memory_space<vmem>>, vector<256x256xbf16>
    %cst = arith.constant dense<0.000000e+00> : vector<8x256xf32>
    %2 = tpu.matmul %0, %1, %cst {dimension_numbers = #tpu.dot_dimension_numbers<[1], [0], [0], [1], [0, 0, 1, 1], [], []>} : vector<8x256xbf16>, vector<256x256xbf16>, vector<8x256xf32> -> vector<8x256xf32>
    %c0_3 = arith.constant 0 : index
    %c0_4 = arith.constant 0 : index
    %3 = vector.load %arg4[%c0_3, %c0_4] : memref<1x256xf32, #tpu.memory_space<vmem>>, vector<1x256xf32>
    %4 = vector.broadcast %3 : vector<1x256xf32> to vector<8x256xf32>
    %5 = arith.addf %2, %4 : vector<8x256xf32>
    %cst_5 = arith.constant 0.000000e+00 : f32
    %6 = vector.broadcast %cst_5 : f32 to vector<8x256xf32>
    %7 = arith.maximumf %5, %6 : vector<8x256xf32>
    %8 = arith.truncf %7 : vector<8x256xf32> to vector<8x256xbf16>
    %c0_6 = arith.constant 0 : index
    %c0_7 = arith.constant 0 : index
    %9 = vector.load %arg5[%c0_6, %c0_7] : memref<256x256xbf16, #tpu.memory_space<vmem>>, vector<256x256xbf16>
    %cst_8 = arith.constant dense<0.000000e+00> : vector<8x256xf32>
    %10 = tpu.matmul %8, %9, %cst_8 {dimension_numbers = #tpu.dot_dimension_numbers<[1], [0], [0], [1], [0, 0, 1, 1], [], []>} : vector<8x256xbf16>, vector<256x256xbf16>, vector<8x256xf32> -> vector<8x256xf32>
    %c0_9 = arith.constant 0 : index
    %c0_10 = arith.constant 0 : index
    %11 = vector.load %arg6[%c0_9, %c0_10] : memref<1x256xf32, #tpu.memory_space<vmem>>, vector<1x256xf32>
    %12 = vector.broadcast %11 : vector<1x256xf32> to vector<8x256xf32>
    %13 = arith.addf %10, %12 : vector<8x256xf32>
    %14 = vector.extract_strided_slice %13 {offsets = [0, 0], sizes = [8, 128], strides = [1, 1]} : vector<8x256xf32> to vector<8x128xf32>
    %15 = vector.extract_strided_slice %13 {offsets = [0, 128], sizes = [8, 128], strides = [1, 1]} : vector<8x256xf32> to vector<8x128xf32>
    %c0_11 = arith.constant 0 : index
    %c0_12 = arith.constant 0 : index
    %16 = vector.load %arg2[%c0_11, %c0_12] : memref<8x128xf32, #tpu.memory_space<vmem>>, vector<8x128xf32>
    %17 = arith.mulf %15, %16 : vector<8x128xf32>
    %18 = arith.addf %14, %17 : vector<8x128xf32>
    %19 = arith.truncf %18 : vector<8x128xf32> to vector<8x128xbf16>
    %c0_13 = arith.constant 0 : index
    %c0_14 = arith.constant 0 : index
    %20 = vector.load %arg7[%c0_13, %c0_14] : memref<128x256xbf16, #tpu.memory_space<vmem>>, vector<128x256xbf16>
    %cst_15 = arith.constant dense<0.000000e+00> : vector<8x256xf32>
    %21 = tpu.matmul %19, %20, %cst_15 {dimension_numbers = #tpu.dot_dimension_numbers<[1], [0], [0], [1], [0, 0, 1, 1], [], []>} : vector<8x128xbf16>, vector<128x256xbf16>, vector<8x256xf32> -> vector<8x256xf32>
    %c0_16 = arith.constant 0 : index
    %c0_17 = arith.constant 0 : index
    %22 = vector.load %arg8[%c0_16, %c0_17] : memref<1x256xf32, #tpu.memory_space<vmem>>, vector<1x256xf32>
    %23 = vector.broadcast %22 : vector<1x256xf32> to vector<8x256xf32>
    %24 = arith.addf %21, %23 : vector<8x256xf32>
    %cst_18 = arith.constant 0.000000e+00 : f32
    %25 = vector.broadcast %cst_18 : f32 to vector<8x256xf32>
    %26 = arith.maximumf %24, %25 : vector<8x256xf32>
    %27 = arith.truncf %26 : vector<8x256xf32> to vector<8x256xbf16>
    %c0_19 = arith.constant 0 : index
    %c0_20 = arith.constant 0 : index
    %28 = vector.load %arg9[%c0_19, %c0_20] : memref<256x256xbf16, #tpu.memory_space<vmem>>, vector<256x256xbf16>
    %cst_21 = arith.constant dense<0.000000e+00> : vector<8x256xf32>
    %29 = tpu.matmul %27, %28, %cst_21 {dimension_numbers = #tpu.dot_dimension_numbers<[1], [0], [0], [1], [0, 0, 1, 1], [], []>} : vector<8x256xbf16>, vector<256x256xbf16>, vector<8x256xf32> -> vector<8x256xf32>
    %c0_22 = arith.constant 0 : index
    %c0_23 = arith.constant 0 : index
    %30 = vector.load %arg10[%c0_22, %c0_23] : memref<1x256xf32, #tpu.memory_space<vmem>>, vector<1x256xf32>
    %31 = vector.broadcast %30 : vector<1x256xf32> to vector<8x256xf32>
    %32 = arith.addf %29, %31 : vector<8x256xf32>
    %33 = arith.negf %32 : vector<8x256xf32>
    %34 = math.exp %33 : vector<8x256xf32>
    %cst_24 = arith.constant 1.000000e+00 : f32
    %35 = vector.broadcast %cst_24 : f32 to vector<8x256xf32>
    %36 = arith.addf %35, %34 : vector<8x256xf32>
    %37 = arith.divf %35, %36 : vector<8x256xf32>
    %c0_25 = arith.constant 0 : index
    %c0_26 = arith.constant 0 : index
    %38 = vector.load %arg11[%c0_25, %c0_26] : memref<8x256xf32, #tpu.memory_space<vmem>>, vector<8x256xf32>
    tpu.vector_store %arg11[%c0_25, %c0_26], %37 {strides = array<i32>} : memref<8x256xf32, #tpu.memory_space<vmem>>, vector<8x256xf32>,
    %c0_27 = arith.constant 0 : index
    %c0_28 = arith.constant 0 : index
    %39 = vector.load %arg12[%c0_27, %c0_28] : memref<8x256xf32, #tpu.memory_space<vmem>>, vector<8x256xf32>
    tpu.vector_store %arg12[%c0_27, %c0_28], %13 {strides = array<i32>} : memref<8x256xf32, #tpu.memory_space<vmem>>, vector<8x256xf32>,
    return
  }
  func.func @transform_0(%arg0: i32) -> (i32, i32) {
    %c0_i32 = arith.constant 0 : i32
    %c0_i32_0 = arith.constant 0 : i32
    return %arg0, %c0_i32 : i32, i32
  }
  func.func @transform_1(%arg0: i32) -> (i32, i32) {
    %c0_i32 = arith.constant 0 : i32
    %c0_i32_0 = arith.constant 0 : i32
    return %arg0, %c0_i32 : i32, i32
  }
  func.func @transform_2(%arg0: i32) -> (i32, i32) {
    %c0_i32 = arith.constant 0 : i32
    %c0_i32_0 = arith.constant 0 : i32
    %c0_i32_1 = arith.constant 0 : i32
    return %c0_i32, %c0_i32_0 : i32, i32
  }
  func.func @transform_3(%arg0: i32) -> (i32, i32) {
    %c0_i32 = arith.constant 0 : i32
    %c0_i32_0 = arith.constant 0 : i32
    %c0_i32_1 = arith.constant 0 : i32
    return %c0_i32, %c0_i32_0 : i32, i32
  }
  func.func @transform_4(%arg0: i32) -> (i32, i32) {
    %c0_i32 = arith.constant 0 : i32
    %c0_i32_0 = arith.constant 0 : i32
    %c0_i32_1 = arith.constant 0 : i32
    return %c0_i32, %c0_i32_0 : i32, i32
  }
  func.func @transform_5(%arg0: i32) -> (i32, i32) {
    %c0_i32 = arith.constant 0 : i32
    %c0_i32_0 = arith.constant 0 : i32
    %c0_i32_1 = arith.constant 0 : i32
    return %c0_i32, %c0_i32_0 : i32, i32
  }
  func.func @transform_6(%arg0: i32) -> (i32, i32) {
    %c0_i32 = arith.constant 0 : i32
    %c0_i32_0 = arith.constant 0 : i32
    %c0_i32_1 = arith.constant 0 : i32
    return %c0_i32, %c0_i32_0 : i32, i32
  }
  func.func @transform_7(%arg0: i32) -> (i32, i32) {
    %c0_i32 = arith.constant 0 : i32
    %c0_i32_0 = arith.constant 0 : i32
    %c0_i32_1 = arith.constant 0 : i32
    return %c0_i32, %c0_i32_0 : i32, i32
  }
  func.func @transform_8(%arg0: i32) -> (i32, i32) {
    %c0_i32 = arith.constant 0 : i32
    %c0_i32_0 = arith.constant 0 : i32
    %c0_i32_1 = arith.constant 0 : i32
    return %c0_i32, %c0_i32_0 : i32, i32
  }
  func.func @transform_9(%arg0: i32) -> (i32, i32) {
    %c0_i32 = arith.constant 0 : i32
    %c0_i32_0 = arith.constant 0 : i32
    %c0_i32_1 = arith.constant 0 : i32
    return %c0_i32, %c0_i32_0 : i32, i32
  }
  func.func @transform_10(%arg0: i32) -> (i32, i32) {
    %c0_i32 = arith.constant 0 : i32
    %c0_i32_0 = arith.constant 0 : i32
    return %arg0, %c0_i32 : i32, i32
  }
  func.func @transform_11(%arg0: i32) -> (i32, i32) {
    %c0_i32 = arith.constant 0 : i32
    %c0_i32_0 = arith.constant 0 : i32
    return %arg0, %c0_i32 : i32, i32
  }
}

</mosaic_0001>

<llo_original>
// kernel: tpu_custom_call.1
$region0: #{tpu_custom_call.1}
  #allocation0 [shape = 'u32[]', space=smem, size = 0x4, offset = 0x4, fixed_abs, tag = 'smem constant byte address 0x4 - core index']
  #allocation1 [shape = 'u32[72,128]{1,0:T(1,128)}', space=vmem, size = 0x9000, scoped, tag = 'internal scratch']
  %s0 = inlined_call_operand.hbm [shape: bf16[8,256], index: 0, kind: input, shape index: {}]
  %s1 = inlined_call_operand.hbm [shape: f32[8,128], index: 1, kind: input, shape index: {}]
  %s2 = inlined_call_operand.hbm [shape: bf16[256,256], index: 2, kind: input, shape index: {}]
  %s3 = inlined_call_operand.vmem [shape: f32[1,256], index: 3, kind: input, shape index: {}]
  %s4 = inlined_call_operand.hbm [shape: bf16[256,256], index: 4, kind: input, shape index: {}]
  %s5 = inlined_call_operand.vmem [shape: f32[1,256], index: 5, kind: input, shape index: {}]
  %s6 = inlined_call_operand.hbm [shape: bf16[128,256], index: 6, kind: input, shape index: {}]
  %s7 = inlined_call_operand.vmem [shape: f32[1,256], index: 7, kind: input, shape index: {}]
  %s8 = inlined_call_operand.hbm [shape: bf16[256,256], index: 8, kind: input, shape index: {}]
  %s9 = inlined_call_operand.vmem [shape: f32[1,256], index: 9, kind: input, shape index: {}]
  %s10 = inlined_call_operand.hbm [shape: f32[8,256], index: 10, kind: output, shape index: {0}]
  %s11 = inlined_call_operand.hbm [shape: f32[8,256], index: 11, kind: output, shape index: {1}]
  %12 = xla_tuple %s10, %s11
  %s13 = sld [smem:[#allocation0]]
  $region82: #{tpu_custom_call.1} parent=0
    _
  %s15 = ssub.s32 1, %s13
  %s16 = scalar_select 0, %s15, %s13
  $region1: #{tpu_custom_call.1} parent=0
    #allocation2 [shape = 'u8[4096]{0}', space=vmem, size = 0x1000, scoped, tag = 'input window, operand 0, single buffered']
    #allocation3 [shape = 's32[1]{0}', space=sflag, size = 0x4, scoped, tag = 'scoped memory for tpu_custom_call.1']
    #allocation4 [shape = 's32[1]{0}', space=sflag, size = 0x4, scoped, tag = 'scoped memory for tpu_custom_call.1']
    #allocation5 [shape = 'u8[4096]{0}', space=vmem, size = 0x1000, scoped, tag = 'input window, operand 1, single buffered']
    #allocation6 [shape = 's32[1]{0}', space=sflag, size = 0x4, scoped, tag = 'scoped memory for tpu_custom_call.1']
    #allocation7 [shape = 'u8[131072]{0}', space=vmem, size = 0x20000, scoped, tag = 'input window, operand 2, single buffered']
    #allocation8 [shape = 'u8[131072]{0}', space=vmem, size = 0x20000, scoped, tag = 'input window, operand 4, single buffered']
    #allocation9 [shape = 's32[1]{0}', space=sflag, size = 0x4, scoped, tag = 'scoped memory for tpu_custom_call.1']
    #allocation10 [shape = 'u8[65536]{0}', space=vmem, size = 0x10000, scoped, tag = 'input window, operand 6, single buffered']
    #allocation11 [shape = 'u8[131072]{0}', space=vmem, size = 0x20000, scoped, tag = 'input window, operand 8, single buffered']
    #allocation12 [shape = 's32[1]{0}', space=sflag, size = 0x4, scoped, tag = 'scoped memory for tpu_custom_call.1']
    #allocation13 [shape = 'u8[8192]{0}', space=vmem, size = 0x2000, scoped, tag = 'output window, operand 0, single buffered']
    #allocation14 [shape = 'u8[8192]{0}', space=vmem, size = 0x2000, scoped, tag = 'output window, operand 1, single buffered']
    #allocation15 [shape = 's32[1]{0}', space=sflag, size = 0x4, scoped, tag = 'scoped memory for tpu_custom_call.1']
    %17 = vsyncpa [#allocation3], 0
    %18 = vsyncpa [#allocation6], 0
    %19 = vsyncpa [#allocation9], 0
    %20 = vsyncpa [#allocation12], 0
    %21 = vsyncpa [#allocation4], 0
    %22 = vsyncpa [#allocation15], 0
    // Predicated region
    $region2: #{tpu_custom_call.1} parent=1 // pred_check
      _
    $region3: #{tpu_custom_call.1} parent=1 // pred_check_branch
      %24 = sbr.rel (0) target = $region5
    $region4: #{tpu_custom_call.1} parent=1 // pred_region
      %26 = vsyncadd [#allocation3], 0
      %s28 = sshll.u32 %s0, 4
      %s29 = int_to_ptr.hbm [resolvable:$true] %s28
      %s30 = sshll.u32 [#allocation2], 4
      %s31 = int_to_ptr.vmem [resolvable:$true] %s30
      %33 = dma.hbm_to_vmem [thread:$0]  %s29, 128, %s31, [#allocation3]
    $region5: #{tpu_custom_call.1} parent=1 // pred_fallthru
      _
    // Predicated region
    $region6: #{tpu_custom_call.1} parent=1 // pred_check
      _
    $region7: #{tpu_custom_call.1} parent=1 // pred_check_branch
      %35 = sbr.rel (0) target = $region9
    $region8: #{tpu_custom_call.1} parent=1 // pred_region
      %37 = vsyncadd [#allocation6], 0
      %s39 = sshll.u32 %s1, 4
      %s40 = int_to_ptr.hbm [resolvable:$true] %s39
      %s41 = sshll.u32 [#allocation5], 4
      %s42 = int_to_ptr.vmem [resolvable:$true] %s41
      %44 = dma.hbm_to_vmem [thread:$0]  %s40, 128, %s42, [#allocation6]
    $region9: #{tpu_custom_call.1} parent=1 // pred_fallthru
      _
    // Predicated region
    $region10: #{tpu_custom_call.1} parent=1 // pred_check
      _
    $region11: #{tpu_custom_call.1} parent=1 // pred_check_branch
      %46 = sbr.rel (0) target = $region13
    $region12: #{tpu_custom_call.1} parent=1 // pred_region
      %48 = vsyncadd [#allocation6], 0
      %s49 = sshll.u32 %s2, 4
      %s50 = int_to_ptr.hbm [resolvable:$true] %s49
      %s51 = sshll.u32 [#allocation7], 4
      %s52 = int_to_ptr.vmem [resolvable:$true] %s51
      %57 = dma.hbm_to_vmem [thread:$0]  %s50, 4096, %s52, [#allocation6], 128, 128, 8
    $region13: #{tpu_custom_call.1} parent=1 // pred_fallthru
      _
    // Predicated region
    $region14: #{tpu_custom_call.1} parent=1 // pred_check
      _
    $region15: #{tpu_custom_call.1} parent=1 // pred_check_branch
      %59 = sbr.rel (0) target = $region17
    $region16: #{tpu_custom_call.1} parent=1 // pred_region
      _
    $region17: #{tpu_custom_call.1} parent=1 // pred_fallthru
      _
    // Predicated region
    $region18: #{tpu_custom_call.1} parent=1 // pred_check
      _
    $region19: #{tpu_custom_call.1} parent=1 // pred_check_branch
      %61 = sbr.rel (0) target = $region21
    $region20: #{tpu_custom_call.1} parent=1 // pred_region
      %63 = vsyncadd [#allocation9], 0
      %s64 = sshll.u32 %s4, 4
      %s65 = int_to_ptr.hbm [resolvable:$true] %s64
      %s66 = sshll.u32 [#allocation8], 4
      %s67 = int_to_ptr.vmem [resolvable:$true] %s66
      %72 = dma.hbm_to_vmem [thread:$0]  %s65, 4096, %s67, [#allocation9], 128, 128, 8
    $region21: #{tpu_custom_call.1} parent=1 // pred_fallthru
      _
    // Predicated region
    $region22: #{tpu_custom_call.1} parent=1 // pred_check
      _
    $region23: #{tpu_custom_call.1} parent=1 // pred_check_branch
      %74 = sbr.rel (0) target = $region25
    $region24: #{tpu_custom_call.1} parent=1 // pred_region
      _
    $region25: #{tpu_custom_call.1} parent=1 // pred_fallthru
      _
    // Predicated region
    $region26: #{tpu_custom_call.1} parent=1 // pred_check
      _
    $region27: #{tpu_custom_call.1} parent=1 // pred_check_branch
      %76 = sbr.rel (0) target = $region29
    $region28: #{tpu_custom_call.1} parent=1 // pred_region
      %78 = vsyncadd [#allocation9], 0
      %s79 = sshll.u32 %s6, 4
      %s80 = int_to_ptr.hbm [resolvable:$true] %s79
      %s81 = sshll.u32 [#allocation10], 4
      %s82 = int_to_ptr.vmem [resolvable:$true] %s81
      %87 = dma.hbm_to_vmem [thread:$0]  %s80, 2048, %s82, [#allocation9], 128, 128, 8
    $region29: #{tpu_custom_call.1} parent=1 // pred_fallthru
      _
    // Predicated region
    $region30: #{tpu_custom_call.1} parent=1 // pred_check
      _
    $region31: #{tpu_custom_call.1} parent=1 // pred_check_branch
      %89 = sbr.rel (0) target = $region33
    $region32: #{tpu_custom_call.1} parent=1 // pred_region
      _
    $region33: #{tpu_custom_call.1} parent=1 // pred_fallthru
      _
    // Predicated region
    $region34: #{tpu_custom_call.1} parent=1 // pred_check
      _
    $region35: #{tpu_custom_call.1} parent=1 // pred_check_branch
      %91 = sbr.rel (0) target = $region37
    $region36: #{tpu_custom_call.1} parent=1 // pred_region
      %93 = vsyncadd [#allocation12], 0
      %s94 = sshll.u32 %s8, 4
      %s95 = int_to_ptr.hbm [resolvable:$true] %s94
      %s96 = sshll.u32 [#allocation11], 4
      %s97 = int_to_ptr.vmem [resolvable:$true] %s96
      %102 = dma.hbm_to_vmem [thread:$0]  %s95, 4096, %s97, [#allocation12], 128, 128, 8
    $region37: #{tpu_custom_call.1} parent=1 // pred_fallthru
      _
    // Predicated region
    $region38: #{tpu_custom_call.1} parent=1 // pred_check
      _
    $region39: #{tpu_custom_call.1} parent=1 // pred_check_branch
      %104 = sbr.rel (0) target = $region41
    $region40: #{tpu_custom_call.1} parent=1 // pred_region
      _
    $region41: #{tpu_custom_call.1} parent=1 // pred_fallthru
      _
    // Predicated region
    $region42: #{tpu_custom_call.1} parent=1 // pred_check
      _
    $region43: #{tpu_custom_call.1} parent=1 // pred_check_branch
      %106 = sbr.rel (0) target = $region45
    $region44: #{tpu_custom_call.1} parent=1 // pred_region
      %108 = dma.done [#allocation3], 128
    $region45: #{tpu_custom_call.1} parent=1 // pred_fallthru
      _
    // Predicated region
    $region46: #{tpu_custom_call.1} parent=1 // pred_check
      _
    $region47: #{tpu_custom_call.1} parent=1 // pred_check_branch
      %110 = sbr.rel (0) target = $region49
    $region48: #{tpu_custom_call.1} parent=1 // pred_region
      %112 = dma.done [#allocation6], 128
    $region49: #{tpu_custom_call.1} parent=1 // pred_fallthru
      _
    // Predicated region
    $region50: #{tpu_custom_call.1} parent=1 // pred_check
      _
    $region51: #{tpu_custom_call.1} parent=1 // pred_check_branch
      %114 = sbr.rel (0) target = $region53
    $region52: #{tpu_custom_call.1} parent=1 // pred_region
      %116 = dma.done [#allocation6], 4096
    $region53: #{tpu_custom_call.1} parent=1 // pred_fallthru
      _
    // Predicated region
    $region54: #{tpu_custom_call.1} parent=1 // pred_check
      _
    $region55: #{tpu_custom_call.1} parent=1 // pred_check_branch
      %118 = sbr.rel (0) target = $region57
    $region56: #{tpu_custom_call.1} parent=1 // pred_region
      %120 = dma.done [#allocation9], 4096
    $region57: #{tpu_custom_call.1} parent=1 // pred_fallthru
      _
    // Predicated region
    $region58: #{tpu_custom_call.1} parent=1 // pred_check
      _
    $region59: #{tpu_custom_call.1} parent=1 // pred_check_branch
      %122 = sbr.rel (0) target = $region61
    $region60: #{tpu_custom_call.1} parent=1 // pred_region
      %124 = dma.done [#allocation9], 2048
    $region61: #{tpu_custom_call.1} parent=1 // pred_fallthru
      _
    // Predicated region
    $region62: #{tpu_custom_call.1} parent=1 // pred_check
      _
    $region63: #{tpu_custom_call.1} parent=1 // pred_check_branch
      %126 = sbr.rel (0) target = $region65
    $region64: #{tpu_custom_call.1} parent=1 // pred_region
      %128 = dma.done [#allocation12], 4096
    $region65: #{tpu_custom_call.1} parent=1 // pred_fallthru
      _
    %v129 = vld [vmem:[#allocation2] sm:$0xff]
    %v130 = vld [vmem:[#allocation7] sm:$0xff]
    %v131 = vld [vmem:[#allocation7 + $0x8] sm:$0xff]
    %v132 = vld [vmem:[#allocation7 + $0x10] sm:$0xff]
    %v133 = vld [vmem:[#allocation7 + $0x18] sm:$0xff]
    %v134 = vld [vmem:[#allocation7 + $0x20] sm:$0xff]
    %v135 = vld [vmem:[#allocation7 + $0x28] sm:$0xff]
    %v136 = vld [vmem:[#allocation7 + $0x30] sm:$0xff]
    %v137 = vld [vmem:[#allocation7 + $0x38] sm:$0xff]
    %v138 = vld [vmem:[#allocation7 + $0x40] sm:$0xff]
    %v139 = vld [vmem:[#allocation7 + $0x48] sm:$0xff]
    %v140 = vld [vmem:[#allocation7 + $0x50] sm:$0xff]
    %v141 = vld [vmem:[#allocation7 + $0x58] sm:$0xff]
    %v142 = vld [vmem:[#allocation7 + $0x60] sm:$0xff]
    %v143 = vld [vmem:[#allocation7 + $0x68] sm:$0xff]
    %v144 = vld [vmem:[#allocation7 + $0x70] sm:$0xff]
    %v145 = vld [vmem:[#allocation7 + $0x78] sm:$0xff]
    %v146 = vld [vmem:[#allocation7 + $0x80] sm:$0xff]
    %v147 = vld [vmem:[#allocation7 + $0x88] sm:$0xff]
    %v148 = vld [vmem:[#allocation7 + $0x90] sm:$0xff]
    %v149 = vld [vmem:[#allocation7 + $0x98] sm:$0xff]
    %v150 = vld [vmem:[#allocation7 + $0xa0] sm:$0xff]
    %v151 = vld [vmem:[#allocation7 + $0xa8] sm:$0xff]
    %v152 = vld [vmem:[#allocation7 + $0xb0] sm:$0xff]
    %v153 = vld [vmem:[#allocation7 + $0xb8] sm:$0xff]
    %v154 = vld [vmem:[#allocation7 + $0xc0] sm:$0xff]
    %v155 = vld [vmem:[#allocation7 + $0xc8] sm:$0xff]
    %v156 = vld [vmem:[#allocation7 + $0xd0] sm:$0xff]
    %v157 = vld [vmem:[#allocation7 + $0xd8] sm:$0xff]
    %v158 = vld [vmem:[#allocation7 + $0xe0] sm:$0xff]
    %v159 = vld [vmem:[#allocation7 + $0xe8] sm:$0xff]
    %v160 = vld [vmem:[#allocation7 + $0xf0] sm:$0xff]
    %v161 = vld [vmem:[#allocation7 + $0xf8] sm:$0xff]
    %v162 = vld [vmem:[%s3] sm:$0x3]
    %v164 = vperm.slane %v162, 0
    %v165 = vperm.slane %v162, 1
    %v169 = vunpack.c.l.b16 %v129
    %v170 = vunpack.c.h.b16 %v129
    %v171 = vpack.c.b16 %v169, %v169
    %v172 = vpack.c.b16 %v170, %v170
    %v207 = vunpack.c.l.b16 %v130
    %v208 = vunpack.c.h.b16 %v130
    %v209 = vunpack.c.l.b16 %v131
    %v210 = vunpack.c.h.b16 %v131
    %v211 = vunpack.c.l.b16 %v132
    %v212 = vunpack.c.h.b16 %v132
    %v213 = vunpack.c.l.b16 %v133
    %v214 = vunpack.c.h.b16 %v133
    %v215 = vunpack.c.l.b16 %v134
    %v216 = vunpack.c.h.b16 %v134
    %v217 = vunpack.c.l.b16 %v135
    %v218 = vunpack.c.h.b16 %v135
    %v219 = vunpack.c.l.b16 %v136
    %v220 = vunpack.c.h.b16 %v136
    %v221 = vunpack.c.l.b16 %v137
    %v222 = vunpack.c.h.b16 %v137
    %v223 = vunpack.c.l.b16 %v138
    %v224 = vunpack.c.h.b16 %v138
    %v225 = vunpack.c.l.b16 %v139
    %v226 = vunpack.c.h.b16 %v139
    %v227 = vunpack.c.l.b16 %v140
    %v228 = vunpack.c.h.b16 %v140
    %v229 = vunpack.c.l.b16 %v141
    %v230 = vunpack.c.h.b16 %v141
    %v231 = vunpack.c.l.b16 %v142
    %v232 = vunpack.c.h.b16 %v142
    %v233 = vunpack.c.l.b16 %v143
    %v234 = vunpack.c.h.b16 %v143
    %v235 = vunpack.c.l.b16 %v144
    %v236 = vunpack.c.h.b16 %v144
    %v237 = vunpack.c.l.b16 %v145
    %v238 = vunpack.c.h.b16 %v145
    %v239 = vunpack.c.l.b16 %v146
    %v240 = vunpack.c.h.b16 %v146
    %v241 = vunpack.c.l.b16 %v147
    %v242 = vunpack.c.h.b16 %v147
    %v243 = vunpack.c.l.b16 %v148
    %v244 = vunpack.c.h.b16 %v148
    %v245 = vunpack.c.l.b16 %v149
    %v246 = vunpack.c.h.b16 %v149
    %v247 = vunpack.c.l.b16 %v150
    %v248 = vunpack.c.h.b16 %v150
    %v249 = vunpack.c.l.b16 %v151
    %v250 = vunpack.c.h.b16 %v151
    %v251 = vunpack.c.l.b16 %v152
    %v252 = vunpack.c.h.b16 %v152
    %v253 = vunpack.c.l.b16 %v153
    %v254 = vunpack.c.h.b16 %v153
    %v255 = vunpack.c.l.b16 %v154
    %v256 = vunpack.c.h.b16 %v154
    %v257 = vunpack.c.l.b16 %v155
    %v258 = vunpack.c.h.b16 %v155
    %v259 = vunpack.c.l.b16 %v156
    %v260 = vunpack.c.h.b16 %v156
    %v261 = vunpack.c.l.b16 %v157
    %v262 = vunpack.c.h.b16 %v157
    %v263 = vunpack.c.l.b16 %v158
    %v264 = vunpack.c.h.b16 %v158
    %v265 = vunpack.c.l.b16 %v159
    %v266 = vunpack.c.h.b16 %v159
    %v267 = vunpack.c.l.b16 %v160
    %v268 = vunpack.c.h.b16 %v160
    %v269 = vunpack.c.l.b16 %v161
    %v270 = vunpack.c.h.b16 %v161
    %v271 = vpack.c.b16 %v209, %v207
    %v272 = vpack.c.b16 %v210, %v208
    %v273 = vpack.c.b16 %v213, %v211
    %v274 = vpack.c.b16 %v214, %v212
    %v275 = vpack.c.b16 %v217, %v215
    %v276 = vpack.c.b16 %v218, %v216
    %v277 = vpack.c.b16 %v221, %v219
    %v278 = vpack.c.b16 %v222, %v220
    %v279 = vpack.c.b16 %v225, %v223
    %v280 = vpack.c.b16 %v226, %v224
    %v281 = vpack.c.b16 %v229, %v227
    %v282 = vpack.c.b16 %v230, %v228
    %v283 = vpack.c.b16 %v233, %v231
    %v284 = vpack.c.b16 %v234, %v232
    %v285 = vpack.c.b16 %v237, %v235
    %v286 = vpack.c.b16 %v238, %v236
    %v287 = vpack.c.b16 %v241, %v239
    %v288 = vpack.c.b16 %v242, %v240
    %v289 = vpack.c.b16 %v245, %v243
    %v290 = vpack.c.b16 %v246, %v244
    %v291 = vpack.c.b16 %v249, %v247
    %v292 = vpack.c.b16 %v250, %v248
    %v293 = vpack.c.b16 %v253, %v251
    %v294 = vpack.c.b16 %v254, %v252
    %v295 = vpack.c.b16 %v257, %v255
    %v296 = vpack.c.b16 %v258, %v256
    %v297 = vpack.c.b16 %v261, %v259
    %v298 = vpack.c.b16 %v262, %v260
    %v299 = vpack.c.b16 %v265, %v263
    %v300 = vpack.c.b16 %v266, %v264
    %v301 = vpack.c.b16 %v269, %v267
    %v302 = vpack.c.b16 %v270, %v268
    %335 = vmatpush.bf16.msra.mxu0 %v285
    %336 = vmatpush.bf16.msra.mxu0 %v283
    %337 = vmatpush.bf16.msra.mxu0 %v281
    %338 = vmatpush.bf16.msra.mxu0 %v279
    %339 = vmatpush.bf16.msra.mxu0 %v277
    %340 = vmatpush.bf16.msra.mxu0 %v275
    %341 = vmatpush.bf16.msra.mxu0 %v273
    %342 = vmatpush.bf16.msra.mxu0 %v271
    %343 = vmatmul.bf16.gmra.mxu0 %v171
    %v344 = vpop.f32.mrf.mxu0
    %v345 = vadd.f32 %v164, %v344
    %v346 = vpop.f32.mrf.mxu0
    %347 = vdwg.mxu0
    %348 = vmatpush.bf16.msra.mxu0 %v301
    %349 = vmatpush.bf16.msra.mxu0 %v299
    %350 = vmatpush.bf16.msra.mxu0 %v297
    %351 = vmatpush.bf16.msra.mxu0 %v295
    %352 = vmatpush.bf16.msra.mxu0 %v293
    %353 = vmatpush.bf16.msra.mxu0 %v291
    %354 = vmatpush.bf16.msra.mxu0 %v289
    %355 = vmatpush.bf16.msra.mxu0 %v287
    %356 = vmatmul.bf16.gmra.mxu0 %v172
    %v357 = vpop.f32.mrf.mxu0
    %v358 = vadd.f32 %v345, %v357
    %v359 = vpop.f32.mrf.mxu0
    %360 = vdwg.mxu0
    %361 = vmatpush.bf16.msra.mxu0 %v286
    %362 = vmatpush.bf16.msra.mxu0 %v284
    %363 = vmatpush.bf16.msra.mxu0 %v282
    %364 = vmatpush.bf16.msra.mxu0 %v280
    %365 = vmatpush.bf16.msra.mxu0 %v278
    %366 = vmatpush.bf16.msra.mxu0 %v276
    %367 = vmatpush.bf16.msra.mxu0 %v274
    %368 = vmatpush.bf16.msra.mxu0 %v272
    %369 = vmatmul.bf16.gmra.mxu0 %v171
    %v370 = vpop.f32.mrf.mxu0
    %v371 = vadd.f32 %v165, %v370
    %v372 = vpop.f32.mrf.mxu0
    %373 = vdwg.mxu0
    %374 = vmatpush.bf16.msra.mxu0 %v302
    %375 = vmatpush.bf16.msra.mxu0 %v300
    %376 = vmatpush.bf16.msra.mxu0 %v298
    %377 = vmatpush.bf16.msra.mxu0 %v296
    %378 = vmatpush.bf16.msra.mxu0 %v294
    %379 = vmatpush.bf16.msra.mxu0 %v292
    %380 = vmatpush.bf16.msra.mxu0 %v290
    %381 = vmatpush.bf16.msra.mxu0 %v288
    %382 = vmatmul.bf16.gmra.mxu0 %v172
    %v383 = vpop.f32.mrf.mxu0
    %v384 = vadd.f32 %v371, %v383
    %v385 = vpop.f32.mrf.mxu0
    %386 = vdwg.mxu0
    %v387 = vmax.f32 %v358, 0.0
    %v388 = vmax.f32 %v384, 0.0
    %v389 = vpack.c.bf16 %v387, %v387
    %v390 = vpack.c.bf16 %v388, %v388
    %v391 = vld [vmem:[#allocation8] sm:$0xff]
    %v392 = vld [vmem:[#allocation8 + $0x8] sm:$0xff]
    %v393 = vld [vmem:[#allocation8 + $0x10] sm:$0xff]
    %v394 = vld [vmem:[#allocation8 + $0x18] sm:$0xff]
    %v395 = vld [vmem:[#allocation8 + $0x20] sm:$0xff]
    %v396 = vld [vmem:[#allocation8 + $0x28] sm:$0xff]
    %v397 = vld [vmem:[#allocation8 + $0x30] sm:$0xff]
    %v398 = vld [vmem:[#allocation8 + $0x38] sm:$0xff]
    %v399 = vld [vmem:[#allocation8 + $0x40] sm:$0xff]
    %v400 = vld [vmem:[#allocation8 + $0x48] sm:$0xff]
    %v401 = vld [vmem:[#allocation8 + $0x50] sm:$0xff]
    %v402 = vld [vmem:[#allocation8 + $0x58] sm:$0xff]
    %v403 = vld [vmem:[#allocation8 + $0x60] sm:$0xff]
    %v404 = vld [vmem:[#allocation8 + $0x68] sm:$0xff]
    %v405 = vld [vmem:[#allocation8 + $0x70] sm:$0xff]
    %v406 = vld [vmem:[#allocation8 + $0x78] sm:$0xff]
    %v407 = vld [vmem:[#allocation8 + $0x80] sm:$0xff]
    %v408 = vld [vmem:[#allocation8 + $0x88] sm:$0xff]
    %v409 = vld [vmem:[#allocation8 + $0x90] sm:$0xff]
    %v410 = vld [vmem:[#allocation8 + $0x98] sm:$0xff]
    %v411 = vld [vmem:[#allocation8 + $0xa0] sm:$0xff]
    %v412 = vld [vmem:[#allocation8 + $0xa8] sm:$0xff]
    %v413 = vld [vmem:[#allocation8 + $0xb0] sm:$0xff]
    %v414 = vld [vmem:[#allocation8 + $0xb8] sm:$0xff]
    %v415 = vld [vmem:[#allocation8 + $0xc0] sm:$0xff]
    %v416 = vld [vmem:[#allocation8 + $0xc8] sm:$0xff]
    %v417 = vld [vmem:[#allocation8 + $0xd0] sm:$0xff]
    %v418 = vld [vmem:[#allocation8 + $0xd8] sm:$0xff]
    %v419 = vld [vmem:[#allocation8 + $0xe0] sm:$0xff]
    %v420 = vld [vmem:[#allocation8 + $0xe8] sm:$0xff]
    %v421 = vld [vmem:[#allocation8 + $0xf0] sm:$0xff]
    %v422 = vld [vmem:[#allocation8 + $0xf8] sm:$0xff]
    %v423 = vld [vmem:[%s5] sm:$0x3]
    %v425 = vperm.slane %v423, 0
    %v426 = vperm.slane %v423, 1
    %v461 = vunpack.c.l.b16 %v391
    %v462 = vunpack.c.h.b16 %v391
    %v463 = vunpack.c.l.b16 %v392
    %v464 = vunpack.c.h.b16 %v392
    %v465 = vunpack.c.l.b16 %v393
    %v466 = vunpack.c.h.b16 %v393
    %v467 = vunpack.c.l.b16 %v394
    %v468 = vunpack.c.h.b16 %v394
    %v469 = vunpack.c.l.b16 %v395
    %v470 = vunpack.c.h.b16 %v395
    %v471 = vunpack.c.l.b16 %v396
    %v472 = vunpack.c.h.b16 %v396
    %v473 = vunpack.c.l.b16 %v397
    %v474 = vunpack.c.h.b16 %v397
    %v475 = vunpack.c.l.b16 %v398
    %v476 = vunpack.c.h.b16 %v398
    %v477 = vunpack.c.l.b16 %v399
    %v478 = vunpack.c.h.b16 %v399
    %v479 = vunpack.c.l.b16 %v400
    %v480 = vunpack.c.h.b16 %v400
    %v481 = vunpack.c.l.b16 %v401
    %v482 = vunpack.c.h.b16 %v401
    %v483 = vunpack.c.l.b16 %v402
    %v484 = vunpack.c.h.b16 %v402
    %v485 = vunpack.c.l.b16 %v403
    %v486 = vunpack.c.h.b16 %v403
    %v487 = vunpack.c.l.b16 %v404
    %v488 = vunpack.c.h.b16 %v404
    %v489 = vunpack.c.l.b16 %v405
    %v490 = vunpack.c.h.b16 %v405
    %v491 = vunpack.c.l.b16 %v406
    %v492 = vunpack.c.h.b16 %v406
    %v493 = vunpack.c.l.b16 %v407
    %v494 = vunpack.c.h.b16 %v407
    %v495 = vunpack.c.l.b16 %v408
    %v496 = vunpack.c.h.b16 %v408
    %v497 = vunpack.c.l.b16 %v409
    %v498 = vunpack.c.h.b16 %v409
    %v499 = vunpack.c.l.b16 %v410
    %v500 = vunpack.c.h.b16 %v410
    %v501 = vunpack.c.l.b16 %v411
    %v502 = vunpack.c.h.b16 %v411
    %v503 = vunpack.c.l.b16 %v412
    %v504 = vunpack.c.h.b16 %v412
    %v505 = vunpack.c.l.b16 %v413
    %v506 = vunpack.c.h.b16 %v413
    %v507 = vunpack.c.l.b16 %v414
    %v508 = vunpack.c.h.b16 %v414
    %v509 = vunpack.c.l.b16 %v415
    %v510 = vunpack.c.h.b16 %v415
    %v511 = vunpack.c.l.b16 %v416
    %v512 = vunpack.c.h.b16 %v416
    %v513 = vunpack.c.l.b16 %v417
    %v514 = vunpack.c.h.b16 %v417
    %v515 = vunpack.c.l.b16 %v418
    %v516 = vunpack.c.h.b16 %v418
    %v517 = vunpack.c.l.b16 %v419
    %v518 = vunpack.c.h.b16 %v419
    %v519 = vunpack.c.l.b16 %v420
    %v520 = vunpack.c.h.b16 %v420
    %v521 = vunpack.c.l.b16 %v421
    %v522 = vunpack.c.h.b16 %v421
    %v523 = vunpack.c.l.b16 %v422
    %v524 = vunpack.c.h.b16 %v422
    %v525 = vpack.c.b16 %v463, %v461
    %v526 = vpack.c.b16 %v464, %v462
    %v527 = vpack.c.b16 %v467, %v465
    %v528 = vpack.c.b16 %v468, %v466
    %v529 = vpack.c.b16 %v471, %v469
    %v530 = vpack.c.b16 %v472, %v470
    %v531 = vpack.c.b16 %v475, %v473
    %v532 = vpack.c.b16 %v476, %v474
    %v533 = vpack.c.b16 %v479, %v477
    %v534 = vpack.c.b16 %v480, %v478
    %v535 = vpack.c.b16 %v483, %v481
    %v536 = vpack.c.b16 %v484, %v482
    %v537 = vpack.c.b16 %v487, %v485
    %v538 = vpack.c.b16 %v488, %v486
    %v539 = vpack.c.b16 %v491, %v489
    %v540 = vpack.c.b16 %v492, %v490
    %v541 = vpack.c.b16 %v495, %v493
    %v542 = vpack.c.b16 %v496, %v494
    %v543 = vpack.c.b16 %v499, %v497
    %v544 = vpack.c.b16 %v500, %v498
    %v545 = vpack.c.b16 %v503, %v501
    %v546 = vpack.c.b16 %v504, %v502
    %v547 = vpack.c.b16 %v507, %v505
    %v548 = vpack.c.b16 %v508, %v506
    %v549 = vpack.c.b16 %v511, %v509
    %v550 = vpack.c.b16 %v512, %v510
    %v551 = vpack.c.b16 %v515, %v513
    %v552 = vpack.c.b16 %v516, %v514
    %v553 = vpack.c.b16 %v519, %v517
    %v554 = vpack.c.b16 %v520, %v518
    %v555 = vpack.c.b16 %v523, %v521
    %v556 = vpack.c.b16 %v524, %v522
    %589 = vmatpush.bf16.msra.mxu0 %v539
    %590 = vmatpush.bf16.msra.mxu0 %v537
    %591 = vmatpush.bf16.msra.mxu0 %v535
    %592 = vmatpush.bf16.msra.mxu0 %v533
    %593 = vmatpush.bf16.msra.mxu0 %v531
    %594 = vmatpush.bf16.msra.mxu0 %v529
    %595 = vmatpush.bf16.msra.mxu0 %v527
    %596 = vmatpush.bf16.msra.mxu0 %v525
    %597 = vmatmul.bf16.gmra.mxu0 %v389
    %v598 = vpop.f32.mrf.mxu0
    %v599 = vadd.f32 %v425, %v598
    %v600 = vpop.f32.mrf.mxu0
    %601 = vdwg.mxu0
    %602 = vmatpush.bf16.msra.mxu0 %v555
    %603 = vmatpush.bf16.msra.mxu0 %v553
    %604 = vmatpush.bf16.msra.mxu0 %v551
    %605 = vmatpush.bf16.msra.mxu0 %v549
    %606 = vmatpush.bf16.msra.mxu0 %v547
    %607 = vmatpush.bf16.msra.mxu0 %v545
    %608 = vmatpush.bf16.msra.mxu0 %v543
    %609 = vmatpush.bf16.msra.mxu0 %v541
    %610 = vmatmul.bf16.gmra.mxu0 %v390
    %v611 = vpop.f32.mrf.mxu0
    %v612 = vadd.f32 %v599, %v611
    %v613 = vpop.f32.mrf.mxu0
    %614 = vdwg.mxu0
    %615 = vmatpush.bf16.msra.mxu0 %v540
    %616 = vmatpush.bf16.msra.mxu0 %v538
    %617 = vmatpush.bf16.msra.mxu0 %v536
    %618 = vmatpush.bf16.msra.mxu0 %v534
    %619 = vmatpush.bf16.msra.mxu0 %v532
    %620 = vmatpush.bf16.msra.mxu0 %v530
    %621 = vmatpush.bf16.msra.mxu0 %v528
    %622 = vmatpush.bf16.msra.mxu0 %v526
    %623 = vmatmul.bf16.gmra.mxu0 %v389
    %v624 = vpop.f32.mrf.mxu0
    %v625 = vadd.f32 %v426, %v624
    %v626 = vpop.f32.mrf.mxu0
    %627 = vdwg.mxu0
    %628 = vmatpush.bf16.msra.mxu0 %v556
    %629 = vmatpush.bf16.msra.mxu0 %v554
    %630 = vmatpush.bf16.msra.mxu0 %v552
    %631 = vmatpush.bf16.msra.mxu0 %v550
    %632 = vmatpush.bf16.msra.mxu0 %v548
    %633 = vmatpush.bf16.msra.mxu0 %v546
    %634 = vmatpush.bf16.msra.mxu0 %v544
    %635 = vmatpush.bf16.msra.mxu0 %v542
    %636 = vmatmul.bf16.gmra.mxu0 %v390
    %v637 = vpop.f32.mrf.mxu0
    %v638 = vadd.f32 %v625, %v637
    %v639 = vpop.f32.mrf.mxu0
    %640 = vdwg.mxu0
    %v641 = vld [vmem:[#allocation5] sm:$0xff]
    %v642 = vmul.f32 %v638, %v641
    %v643 = vadd.f32 %v612, %v642
    %v644 = vpack.c.bf16 %v643, %v643
    %v645 = vld [vmem:[#allocation10] sm:$0xff]
    %v646 = vld [vmem:[#allocation10 + $0x8] sm:$0xff]
    %v647 = vld [vmem:[#allocation10 + $0x10] sm:$0xff]
    %v648 = vld [vmem:[#allocation10 + $0x18] sm:$0xff]
    %v649 = vld [vmem:[#allocation10 + $0x20] sm:$0xff]
    %v650 = vld [vmem:[#allocation10 + $0x28] sm:$0xff]
    %v651 = vld [vmem:[#allocation10 + $0x30] sm:$0xff]
    %v652 = vld [vmem:[#allocation10 + $0x38] sm:$0xff]
    %v653 = vld [vmem:[#allocation10 + $0x40] sm:$0xff]
    %v654 = vld [vmem:[#allocation10 + $0x48] sm:$0xff]
    %v655 = vld [vmem:[#allocation10 + $0x50] sm:$0xff]
    %v656 = vld [vmem:[#allocation10 + $0x58] sm:$0xff]
    %v657 = vld [vmem:[#allocation10 + $0x60] sm:$0xff]
    %v658 = vld [vmem:[#allocation10 + $0x68] sm:$0xff]
    %v659 = vld [vmem:[#allocation10 + $0x70] sm:$0xff]
    %v660 = vld [vmem:[#allocation10 + $0x78] sm:$0xff]
    %v661 = vld [vmem:[%s7] sm:$0x3]
    %v663 = vperm.slane %v661, 0
    %v664 = vperm.slane %v661, 1
    %v683 = vunpack.c.l.b16 %v645
    %v684 = vunpack.c.h.b16 %v645
    %v685 = vunpack.c.l.b16 %v646
    %v686 = vunpack.c.h.b16 %v646
    %v687 = vunpack.c.l.b16 %v647
    %v688 = vunpack.c.h.b16 %v647
    %v689 = vunpack.c.l.b16 %v648
    %v690 = vunpack.c.h.b16 %v648
    %v691 = vunpack.c.l.b16 %v649
    %v692 = vunpack.c.h.b16 %v649
    %v693 = vunpack.c.l.b16 %v650
    %v694 = vunpack.c.h.b16 %v650
    %v695 = vunpack.c.l.b16 %v651
    %v696 = vunpack.c.h.b16 %v651
    %v697 = vunpack.c.l.b16 %v652
    %v698 = vunpack.c.h.b16 %v652
    %v699 = vunpack.c.l.b16 %v653
    %v700 = vunpack.c.h.b16 %v653
    %v701 = vunpack.c.l.b16 %v654
    %v702 = vunpack.c.h.b16 %v654
    %v703 = vunpack.c.l.b16 %v655
    %v704 = vunpack.c.h.b16 %v655
    %v705 = vunpack.c.l.b16 %v656
    %v706 = vunpack.c.h.b16 %v656
    %v707 = vunpack.c.l.b16 %v657
    %v708 = vunpack.c.h.b16 %v657
    %v709 = vunpack.c.l.b16 %v658
    %v710 = vunpack.c.h.b16 %v658
    %v711 = vunpack.c.l.b16 %v659
    %v712 = vunpack.c.h.b16 %v659
    %v713 = vunpack.c.l.b16 %v660
    %v714 = vunpack.c.h.b16 %v660
    %v715 = vpack.c.b16 %v685, %v683
    %v716 = vpack.c.b16 %v686, %v684
    %v717 = vpack.c.b16 %v689, %v687
    %v718 = vpack.c.b16 %v690, %v688
    %v719 = vpack.c.b16 %v693, %v691
    %v720 = vpack.c.b16 %v694, %v692
    %v721 = vpack.c.b16 %v697, %v695
    %v722 = vpack.c.b16 %v698, %v696
    %v723 = vpack.c.b16 %v701, %v699
    %v724 = vpack.c.b16 %v702, %v700
    %v725 = vpack.c.b16 %v705, %v703
    %v726 = vpack.c.b16 %v706, %v704
    %v727 = vpack.c.b16 %v709, %v707
    %v728 = vpack.c.b16 %v710, %v708
    %v729 = vpack.c.b16 %v713, %v711
    %v730 = vpack.c.b16 %v714, %v712
    %747 = vmatpush.bf16.msra.mxu0 %v729
    %748 = vmatpush.bf16.msra.mxu0 %v727
    %749 = vmatpush.bf16.msra.mxu0 %v725
    %750 = vmatpush.bf16.msra.mxu0 %v723
    %751 = vmatpush.bf16.msra.mxu0 %v721
    %752 = vmatpush.bf16.msra.mxu0 %v719
    %753 = vmatpush.bf16.msra.mxu0 %v717
    %754 = vmatpush.bf16.msra.mxu0 %v715
    %755 = vmatmul.bf16.gmra.mxu0 %v644
    %v756 = vpop.f32.mrf.mxu0
    %v757 = vadd.f32 %v663, %v756
    %v758 = vpop.f32.mrf.mxu0
    %759 = vdwg.mxu0
    %760 = vmatpush.bf16.msra.mxu0 %v730
    %761 = vmatpush.bf16.msra.mxu0 %v728
    %762 = vmatpush.bf16.msra.mxu0 %v726
    %763 = vmatpush.bf16.msra.mxu0 %v724
    %764 = vmatpush.bf16.msra.mxu0 %v722
    %765 = vmatpush.bf16.msra.mxu0 %v720
    %766 = vmatpush.bf16.msra.mxu0 %v718
    %767 = vmatpush.bf16.msra.mxu0 %v716
    %768 = vmatmul.bf16.gmra.mxu0 %v644
    %v769 = vpop.f32.mrf.mxu0
    %v770 = vadd.f32 %v664, %v769
    %v771 = vpop.f32.mrf.mxu0
    %772 = vdwg.mxu0
    %v773 = vmax.f32 %v757, 0.0
    %v774 = vmax.f32 %v770, 0.0
    %v775 = vpack.c.bf16 %v773, %v773
    %v776 = vpack.c.bf16 %v774, %v774
    %v777 = vld [vmem:[#allocation11] sm:$0xff]
    %v778 = vld [vmem:[#allocation11 + $0x8] sm:$0xff]
    %v779 = vld [vmem:[#allocation11 + $0x10] sm:$0xff]
    %v780 = vld [vmem:[#allocation11 + $0x18] sm:$0xff]
    %v781 = vld [vmem:[#allocation11 + $0x20] sm:$0xff]
    %v782 = vld [vmem:[#allocation11 + $0x28] sm:$0xff]
    %v783 = vld [vmem:[#allocation11 + $0x30] sm:$0xff]
    %v784 = vld [vmem:[#allocation11 + $0x38] sm:$0xff]
    %v785 = vld [vmem:[#allocation11 + $0x40] sm:$0xff]
    %v786 = vld [vmem:[#allocation11 + $0x48] sm:$0xff]
    %v787 = vld [vmem:[#allocation11 + $0x50] sm:$0xff]
    %v788 = vld [vmem:[#allocation11 + $0x58] sm:$0xff]
    %v789 = vld [vmem:[#allocation11 + $0x60] sm:$0xff]
    %v790 = vld [vmem:[#allocation11 + $0x68] sm:$0xff]
    %v791 = vld [vmem:[#allocation11 + $0x70] sm:$0xff]
    %v792 = vld [vmem:[#allocation11 + $0x78] sm:$0xff]
    %v793 = vld [vmem:[#allocation11 + $0x80] sm:$0xff]
    %v794 = vld [vmem:[#allocation11 + $0x88] sm:$0xff]
    %v795 = vld [vmem:[#allocation11 + $0x90] sm:$0xff]
    %v796 = vld [vmem:[#allocation11 + $0x98] sm:$0xff]
    %v797 = vld [vmem:[#allocation11 + $0xa0] sm:$0xff]
    %v798 = vld [vmem:[#allocation11 + $0xa8] sm:$0xff]
    %v799 = vld [vmem:[#allocation11 + $0xb0] sm:$0xff]
    %v800 = vld [vmem:[#allocation11 + $0xb8] sm:$0xff]
    %v801 = vld [vmem:[#allocation11 + $0xc0] sm:$0xff]
    %v802 = vld [vmem:[#allocation11 + $0xc8] sm:$0xff]
    %v803 = vld [vmem:[#allocation11 + $0xd0] sm:$0xff]
    %v804 = vld [vmem:[#allocation11 + $0xd8] sm:$0xff]
    %v805 = vld [vmem:[#allocation11 + $0xe0] sm:$0xff]
    %v806 = vld [vmem:[#allocation11 + $0xe8] sm:$0xff]
    %v807 = vld [vmem:[#allocation11 + $0xf0] sm:$0xff]
    %v808 = vld [vmem:[#allocation11 + $0xf8] sm:$0xff]
    %v809 = vld [vmem:[%s9] sm:$0x3]
    %v811 = vperm.slane %v809, 0
    %v812 = vperm.slane %v809, 1
    %v847 = vunpack.c.l.b16 %v777
    %v848 = vunpack.c.h.b16 %v777
    %v849 = vunpack.c.l.b16 %v778
    %v850 = vunpack.c.h.b16 %v778
    %v851 = vunpack.c.l.b16 %v779
    %v852 = vunpack.c.h.b16 %v779
    %v853 = vunpack.c.l.b16 %v780
    %v854 = vunpack.c.h.b16 %v780
    %v855 = vunpack.c.l.b16 %v781
    %v856 = vunpack.c.h.b16 %v781
    %v857 = vunpack.c.l.b16 %v782
    %v858 = vunpack.c.h.b16 %v782
    %v859 = vunpack.c.l.b16 %v783
    %v860 = vunpack.c.h.b16 %v783
    %v861 = vunpack.c.l.b16 %v784
    %v862 = vunpack.c.h.b16 %v784
    %v863 = vunpack.c.l.b16 %v785
    %v864 = vunpack.c.h.b16 %v785
    %v865 = vunpack.c.l.b16 %v786
    %v866 = vunpack.c.h.b16 %v786
    %v867 = vunpack.c.l.b16 %v787
    %v868 = vunpack.c.h.b16 %v787
    %v869 = vunpack.c.l.b16 %v788
    %v870 = vunpack.c.h.b16 %v788
    %v871 = vunpack.c.l.b16 %v789
    %v872 = vunpack.c.h.b16 %v789
    %v873 = vunpack.c.l.b16 %v790
    %v874 = vunpack.c.h.b16 %v790
    %v875 = vunpack.c.l.b16 %v791
    %v876 = vunpack.c.h.b16 %v791
    %v877 = vunpack.c.l.b16 %v792
    %v878 = vunpack.c.h.b16 %v792
    %v879 = vunpack.c.l.b16 %v793
    %v880 = vunpack.c.h.b16 %v793
    %v881 = vunpack.c.l.b16 %v794
    %v882 = vunpack.c.h.b16 %v794
    %v883 = vunpack.c.l.b16 %v795
    %v884 = vunpack.c.h.b16 %v795
    %v885 = vunpack.c.l.b16 %v796
    %v886 = vunpack.c.h.b16 %v796
    %v887 = vunpack.c.l.b16 %v797
    %v888 = vunpack.c.h.b16 %v797
    %v889 = vunpack.c.l.b16 %v798
    %v890 = vunpack.c.h.b16 %v798
    %v891 = vunpack.c.l.b16 %v799
    %v892 = vunpack.c.h.b16 %v799
    %v893 = vunpack.c.l.b16 %v800
    %v894 = vunpack.c.h.b16 %v800
    %v895 = vunpack.c.l.b16 %v801
    %v896 = vunpack.c.h.b16 %v801
    %v897 = vunpack.c.l.b16 %v802
    %v898 = vunpack.c.h.b16 %v802
    %v899 = vunpack.c.l.b16 %v803
    %v900 = vunpack.c.h.b16 %v803
    %v901 = vunpack.c.l.b16 %v804
    %v902 = vunpack.c.h.b16 %v804
    %v903 = vunpack.c.l.b16 %v805
    %v904 = vunpack.c.h.b16 %v805
    %v905 = vunpack.c.l.b16 %v806
    %v906 = vunpack.c.h.b16 %v806
    %v907 = vunpack.c.l.b16 %v807
    %v908 = vunpack.c.h.b16 %v807
    %v909 = vunpack.c.l.b16 %v808
    %v910 = vunpack.c.h.b16 %v808
    %v911 = vpack.c.b16 %v849, %v847
    %v912 = vpack.c.b16 %v850, %v848
    %v913 = vpack.c.b16 %v853, %v851
    %v914 = vpack.c.b16 %v854, %v852
    %v915 = vpack.c.b16 %v857, %v855
    %v916 = vpack.c.b16 %v858, %v856
    %v917 = vpack.c.b16 %v861, %v859
    %v918 = vpack.c.b16 %v862, %v860
    %v919 = vpack.c.b16 %v865, %v863
    %v920 = vpack.c.b16 %v866, %v864
    %v921 = vpack.c.b16 %v869, %v867
    %v922 = vpack.c.b16 %v870, %v868
    %v923 = vpack.c.b16 %v873, %v871
    %v924 = vpack.c.b16 %v874, %v872
    %v925 = vpack.c.b16 %v877, %v875
    %v926 = vpack.c.b16 %v878, %v876
    %v927 = vpack.c.b16 %v881, %v879
    %v928 = vpack.c.b16 %v882, %v880
    %v929 = vpack.c.b16 %v885, %v883
    %v930 = vpack.c.b16 %v886, %v884
    %v931 = vpack.c.b16 %v889, %v887
    %v932 = vpack.c.b16 %v890, %v888
    %v933 = vpack.c.b16 %v893, %v891
    %v934 = vpack.c.b16 %v894, %v892
    %v935 = vpack.c.b16 %v897, %v895
    %v936 = vpack.c.b16 %v898, %v896
    %v937 = vpack.c.b16 %v901, %v899
    %v938 = vpack.c.b16 %v902, %v900
    %v939 = vpack.c.b16 %v905, %v903
    %v940 = vpack.c.b16 %v906, %v904
    %v941 = vpack.c.b16 %v909, %v907
    %v942 = vpack.c.b16 %v910, %v908
    %975 = vmatpush.bf16.msra.mxu0 %v925
    %976 = vmatpush.bf16.msra.mxu0 %v923
    %977 = vmatpush.bf16.msra.mxu0 %v921
    %978 = vmatpush.bf16.msra.mxu0 %v919
    %979 = vmatpush.bf16.msra.mxu0 %v917
    %980 = vmatpush.bf16.msra.mxu0 %v915
    %981 = vmatpush.bf16.msra.mxu0 %v913
    %982 = vmatpush.bf16.msra.mxu0 %v911
    %983 = vmatmul.bf16.gmra.mxu0 %v775
    %v984 = vpop.f32.mrf.mxu0
    %v985 = vadd.f32 %v811, %v984
    %v986 = vpop.f32.mrf.mxu0
    %987 = vdwg.mxu0
    %988 = vmatpush.bf16.msra.mxu0 %v941
    %989 = vmatpush.bf16.msra.mxu0 %v939
    %990 = vmatpush.bf16.msra.mxu0 %v937
    %991 = vmatpush.bf16.msra.mxu0 %v935
    %992 = vmatpush.bf16.msra.mxu0 %v933
    %993 = vmatpush.bf16.msra.mxu0 %v931
    %994 = vmatpush.bf16.msra.mxu0 %v929
    %995 = vmatpush.bf16.msra.mxu0 %v927
    %996 = vmatmul.bf16.gmra.mxu0 %v776
    %v997 = vpop.f32.mrf.mxu0
    %v998 = vadd.f32 %v985, %v997
    %v999 = vpop.f32.mrf.mxu0
    %1000 = vdwg.mxu0
    %1001 = vmatpush.bf16.msra.mxu0 %v926
    %1002 = vmatpush.bf16.msra.mxu0 %v924
    %1003 = vmatpush.bf16.msra.mxu0 %v922
    %1004 = vmatpush.bf16.msra.mxu0 %v920
    %1005 = vmatpush.bf16.msra.mxu0 %v918
    %1006 = vmatpush.bf16.msra.mxu0 %v916
    %1007 = vmatpush.bf16.msra.mxu0 %v914
    %1008 = vmatpush.bf16.msra.mxu0 %v912
    %1009 = vmatmul.bf16.gmra.mxu0 %v775
    %v1010 = vpop.f32.mrf.mxu0
    %v1011 = vadd.f32 %v812, %v1010
    %v1012 = vpop.f32.mrf.mxu0
    %1013 = vdwg.mxu0
    %1014 = vmatpush.bf16.msra.mxu0 %v942
    %1015 = vmatpush.bf16.msra.mxu0 %v940
    %1016 = vmatpush.bf16.msra.mxu0 %v938
    %1017 = vmatpush.bf16.msra.mxu0 %v936
    %1018 = vmatpush.bf16.msra.mxu0 %v934
    %1019 = vmatpush.bf16.msra.mxu0 %v932
    %1020 = vmatpush.bf16.msra.mxu0 %v930
    %1021 = vmatpush.bf16.msra.mxu0 %v928
    %1022 = vmatmul.bf16.gmra.mxu0 %v776
    %v1023 = vpop.f32.mrf.mxu0
    %v1024 = vadd.f32 %v1011, %v1023
    %v1025 = vpop.f32.mrf.mxu0
    %1026 = vdwg.mxu0
    %v1027 = vxor.u32 %v998, 2147483648
    %v1028 = vxor.u32 %v1024, 2147483648
    %v1029 = vmul.f32 %v1027, 1.442695
    %v1030 = vpow.pop %v1029
    %v1031 = vmul.f32 %v1028, 1.442695
    %v1032 = vpow.pop %v1031
    %v1033 = vadd.f32 %v1030, 1.0
    %v1034 = vadd.f32 %v1032, 1.0
    %v1035 = vrcp.pop %v1033
    %v1036 = vmul.f32 %v1033, %v1035
    %v1037 = vsub.f32 1.0, %v1036
    %v1038 = vmul.f32 %v1035, %v1037
    %v1039 = vadd.f32 %v1035, %v1038
    %vm1040 = vweird.f32 %v1033
    %vm1041 = vweird.f32 %v1035
    %vm1042 = vmor %vm1040, %vm1041
    %v1043 = vsel %vm1042, %v1035, %v1039
    %v1044 = vand.u32 2147483647, %v1033
    %vm1045 = vcmp.eq.f32.partialorder %v1044, 8.507059e+37
    %v1046 = vand.u32 %v1033, 2147483648
    %v1047 = vor.u32 1.1754944e-38, %v1046
    %v1048 = vsel %vm1045, %v1047, %v1043
    %v1049 = vmul.f32 1.0, %v1048
    %v1050 = vrcp.pop %v1034
    %v1051 = vmul.f32 %v1034, %v1050
    %v1052 = vsub.f32 1.0, %v1051
    %v1053 = vmul.f32 %v1050, %v1052
    %v1054 = vadd.f32 %v1050, %v1053
    %vm1055 = vweird.f32 %v1034
    %vm1056 = vweird.f32 %v1050
    %vm1057 = vmor %vm1055, %vm1056
    %v1058 = vsel %vm1057, %v1050, %v1054
    %v1059 = vand.u32 2147483647, %v1034
    %vm1060 = vcmp.eq.f32.partialorder %v1059, 8.507059e+37
    %v1061 = vand.u32 %v1034, 2147483648
    %v1062 = vor.u32 1.1754944e-38, %v1061
    %v1063 = vsel %vm1060, %v1062, %v1058
    %v1064 = vmul.f32 1.0, %v1063
    %1065 = vst [vmem:[#allocation13] sm:$0xff] %v1049
    %1066 = vst [vmem:[#allocation13 + $0x8] sm:$0xff] %v1064
    %1067 = vst [vmem:[#allocation14] sm:$0xff] %v612
    %1068 = vst [vmem:[#allocation14 + $0x8] sm:$0xff] %v638
    // Predicated region
    $region66: #{tpu_custom_call.1} parent=1 // pred_check
      _
    $region67: #{tpu_custom_call.1} parent=1 // pred_check_branch
      %1070 = sbr.rel (0) target = $region69
    $region68: #{tpu_custom_call.1} parent=1 // pred_region
      %1072 = vsyncadd [#allocation4], 0
      %s1074 = sshll.u32 [#allocation13], 4
      %s1075 = int_to_ptr.vmem [resolvable:$true] %s1074
      %s1076 = sshll.u32 %s10, 4
      %s1077 = int_to_ptr.hbm [resolvable:$true] %s1076
      %1079 = dma.vmem_to_hbm [thread:$0]  %s1075, 256, %s1077, [#allocation4]
    $region69: #{tpu_custom_call.1} parent=1 // pred_fallthru
      _
    // Predicated region
    $region70: #{tpu_custom_call.1} parent=1 // pred_check
      _
    $region71: #{tpu_custom_call.1} parent=1 // pred_check_branch
      %1081 = sbr.rel (0) target = $region73
    $region72: #{tpu_custom_call.1} parent=1 // pred_region
      %1083 = vsyncadd [#allocation15], 0
      %s1085 = sshll.u32 [#allocation14], 4
      %s1086 = int_to_ptr.vmem [resolvable:$true] %s1085
      %s1087 = sshll.u32 %s11, 4
      %s1088 = int_to_ptr.hbm [resolvable:$true] %s1087
      %1090 = dma.vmem_to_hbm [thread:$0]  %s1086, 256, %s1088, [#allocation15]
    $region73: #{tpu_custom_call.1} parent=1 // pred_fallthru
      _
    // Predicated region
    $region74: #{tpu_custom_call.1} parent=1 // pred_check
      _
    $region75: #{tpu_custom_call.1} parent=1 // pred_check_branch
      %1092 = sbr.rel (0) target = $region77
    $region76: #{tpu_custom_call.1} parent=1 // pred_region
      %1094 = dma.done [#allocation4], 256
    $region77: #{tpu_custom_call.1} parent=1 // pred_fallthru
      _
    // Predicated region
    $region78: #{tpu_custom_call.1} parent=1 // pred_check
      _
    $region79: #{tpu_custom_call.1} parent=1 // pred_check_branch
      %1096 = sbr.rel (0) target = $region81
    $region80: #{tpu_custom_call.1} parent=1 // pred_region
      %1098 = dma.done [#allocation15], 256
    $region81: #{tpu_custom_call.1} parent=1 // pred_fallthru
      _
    %1099 = vsyncpa [#allocation3], 1
    %1100 = vsyncpa [#allocation6], 1
    %1101 = vsyncpa [#allocation9], 1
    %1102 = vsyncpa [#allocation12], 1
    %1103 = vsyncpa [#allocation4], 1
    %1104 = vsyncpa [#allocation15], 1

</llo_original>
